<compile_context>
chip_gen: v7x
topology: tpu7x:2x2x1
jax: 0.10.0
libtpu: 0.0.40
codegen_flags: <defaults>
</compile_context>

<pallas_src>
import functools

import jax
import jax.numpy as jnp
from jax.experimental import pallas as pl
from jax.experimental.pallas import tpu as pltpu

LANE = 128        # last-dim tiling unit (vreg lane count)
SUBLANE = 8       # second-to-last-dim tiling unit for f32
# Conservative cross-generation working-set budget (v5e scoped default 16 MiB,
# v6e/v7x 32 MiB scoped; v7x physical VMEM is only 64 MiB per TC).
VMEM_BUDGET_BYTES = 32 * 2**20
VMEM_LIMIT_CAP_BYTES = 48 * 2**20


def _round_up(n: int, m: int) -> int:
    return ((n + m - 1) // m) * m


def _fused_mlp_kernel(*refs, n_layers: int):
    """refs = (x_ref, w1_ref, b1_ref, ..., wn_ref, bn_ref, o_ref).

    Computes x -> Linear -> Tanh -> ... -> Linear entirely in VMEM/vregs;
    only the final activation is stored.
    """
    x_ref, o_ref = refs[0], refs[-1]
    h = x_ref[...]
    for i in range(n_layers):  # static unroll (traced once)
        w_ref = refs[1 + 2 * i]
        b_ref = refs[2 + 2 * i]
        if h.dtype != w_ref.dtype:
            h = h.astype(w_ref.dtype)  # bf16 weights -> bf16 MXU operands
        acc = jnp.dot(h, w_ref[...], preferred_element_type=jnp.float32)
        acc = acc + b_ref[...].astype(jnp.float32)  # (1, Dout) row broadcast
        if i < n_layers - 1:
            h = jnp.tanh(acc)  # EUP transcendental, f32
        else:
            h = acc            # no activation on last layer
    o_ref[...] = h.astype(o_ref.dtype)
    # TODO(synk): for very wide layers (din*dout*4B >> a few MiB) chunk the
    # output-feature (N) axis and stage h in an explicit pltpu.VMEM scratch to
    # bound vreg/VMEM pressure instead of carrying one big traced value.


def prepare_mlp_params(params, *, weight_dtype=None):
    """Zero-pad every feature dim to a multiple of LANE (done once, at init)
    and optionally cast weights/biases (e.g. bf16 for full MXU rate).

    Zero padding is semantics-preserving: padded input columns multiply zero
    weight rows, padded output columns have zero weight cols + zero bias, and
    tanh(0) == 0, so padding never contaminates real outputs.
    """
    prepared = []
    for w, b in params:
        din, dout = w.shape
        dt = w.dtype if weight_dtype is None else weight_dtype
        dinp, doutp = _round_up(din, LANE), _round_up(dout, LANE)
        wp = jnp.zeros((dinp, doutp), dt).at[:din, :dout].set(w.astype(dt))
        bp = jnp.zeros((1, doutp), dt).at[:, :dout].set(
            b.reshape(1, -1).astype(dt))
        prepared.append((wp, bp))
    return prepared


def mlp_forward(x, prepared_params, out_features, *,
                max_batch_tile: int = 1024, force_tiled: bool = False):
    """Fused MLP forward matching MLP.forward (Linear -> Tanh -> ... -> Linear).

    `prepared_params` must come from prepare_mlp_params (lane-padded).
    Returns (B, out_features).
    """
    n_layers = len(prepared_params)
    B, din = x.shape
    din_p = prepared_params[0][0].shape[0]
    dout_p = prepared_params[-1][0].shape[1]
    itemsize = x.dtype.itemsize

    if din != din_p:  # pad input features with zeros (no effect on result)
        x = jnp.pad(x, ((0, 0), (0, din_p - din)))

    flat_inputs = [x]
    for w, b in prepared_params:
        flat_inputs.extend((w, b))

    kernel = functools.partial(_fused_mlp_kernel, n_layers=n_layers)
    out_shape = jax.ShapeDtypeStruct((B, dout_p), x.dtype)

    # ---- byte-based sizing (not a batch-size heuristic) ----
    w_bytes = sum(int(w.size) * w.dtype.itemsize + int(b.size) * b.dtype.itemsize
                  for w, b in prepared_params)
    max_width = max(max(w.shape) for w, _ in prepared_params)
    act_bytes = B * max(din_p, dout_p) * itemsize
    interm_bytes = 2 * B * max_width * 4          # f32 intermediates (temps)
    whole_bytes = w_bytes + 2 * act_bytes + interm_bytes

    if whole_bytes <= VMEM_BUDGET_BYTES and not force_tiled:
        # Whole problem fits in VMEM: single invocation, no grid, no software
        # pipeline; everything is a whole-array VMEM block.
        vmem = pl.BlockSpec(memory_space=pltpu.MemorySpace.VMEM)
        vmem_limit = int(min(max(2 * whole_bytes, 8 * 2**20),
                             VMEM_LIMIT_CAP_BYTES))
        out = pl.pallas_call(
            kernel,
            out_shape=out_shape,
            in_specs=[vmem] * len(flat_inputs),
            out_specs=vmem,
            compiler_params=pltpu.CompilerParams(vmem_limit_bytes=vmem_limit),
        )(*flat_inputs)
        return out[:, :out_features]
    # TODO(synk): for weight-heavy, small-batch shapes, stream each layer's
    # weights from HBM (memory_space=pl.ANY + make_async_copy double-buffer)
    # so layer i+1 weights load while layer i computes.

    # ---- batch-tiled path ----
    # Per-row VMEM cost: double-buffered x and out tiles + the live f32
    # intermediate slab; weights are resident (counted at 2x for the fallback
    # double-buffered case).
    per_row = (2 * din_p + 2 * dout_p) * itemsize + 2 * max_width * 4
    budget_rows = max(VMEM_BUDGET_BYTES - 2 * w_bytes,
                      per_row * SUBLANE) // per_row
    batch_tile = (int(budget_rows) // SUBLANE) * SUBLANE
    batch_tile = max(SUBLANE, min(batch_tile, max_batch_tile,
                                  _round_up(B, SUBLANE)))

    # Prefer an even number of grid steps for the 2 TensorCores on v7x.
    num_tiles = pl.cdiv(B, batch_tile)
    if num_tiles > 1 and num_tiles % 2 == 1:
        batch_tile = max(SUBLANE, _round_up(pl.cdiv(B, num_tiles + 1), SUBLANE))
    num_tiles = pl.cdiv(B, batch_tile)

    tiled_working = 2 * w_bytes + batch_tile * per_row
    vmem_limit = int(min(max(2 * tiled_working, 8 * 2**20),
                         VMEM_LIMIT_CAP_BYTES))

    def _call(buffered_weights: bool):
        wkw = dict(pipeline_mode=pl.Buffered(1)) if buffered_weights else {}
        in_specs = [pl.BlockSpec((batch_tile, din_p), lambda i: (i, 0))]
        for w, _b in prepared_params:
            dw_in, dw_out = w.shape
            # Weight/bias index maps are grid-constant -> a single resident
            # buffer (no double-buffering) halves their VMEM footprint.
            in_specs.append(pl.BlockSpec((dw_in, dw_out), lambda i: (0, 0), **wkw))
            in_specs.append(pl.BlockSpec((1, dw_out), lambda i: (0, 0), **wkw))
        return pl.pallas_call(
            kernel,
            out_shape=out_shape,
            grid=(num_tiles,),
            in_specs=in_specs,
            out_specs=pl.BlockSpec((batch_tile, dout_p), lambda i: (i, 0)),
            compiler_params=pltpu.CompilerParams(
                dimension_semantics=("parallel",),   # megacore sharding (v7x)
                vmem_limit_bytes=vmem_limit),
        )(*flat_inputs)

    try:
        out = _call(buffered_weights=True)
    except Exception:
        # pl.Buffered(1) / pipeline_mode not supported on this jax version:
        # fall back to default double-buffering (correct, slightly more VMEM).
        out = _call(buffered_weights=False)
    return out[:, :out_features]


def init_mlp_params(key, sizes, dtype=jnp.float32):
    """Deterministic init matching nn.Linear's U(-1/sqrt(fan_in), 1/sqrt(fan_in))."""
    params = []
    for i in range(len(sizes) - 1):
        fan_in, fan_out = sizes[i], sizes[i + 1]
        key, kw, kb = jax.random.split(key, 3)
        bound = 1.0 / jnp.sqrt(fan_in)
        w = jax.random.uniform(kw, (fan_in, fan_out), dtype, -bound, bound)
        b = jax.random.uniform(kb, (1, fan_out), dtype, -bound, bound)
        params.append((w, b))
    return params


def mlp_reference(x, params):
    n = len(params)
    for i, (w, b) in enumerate(params):
        x = x @ w + b
        if i < n - 1:
            x = jnp.tanh(x)
    return x


if __name__ == "__main__":
    key = jax.random.PRNGKey(0)
    # MLP(sizes=(32, 64, 16)) -> Linear(32,64), Tanh, Linear(64,16).
    # Feature dims are lane-padded to 128 inside prepare_mlp_params.
    sizes = (32, 64, 16)

    kx, kp, kx2 = jax.random.split(key, 3)
    params = init_mlp_params(kp, sizes)
    prepared = prepare_mlp_params(params)                       # f32, padded

    # 1) Small batch -> grid-less fused path.
    x = jax.random.normal(kx, (8, sizes[0]), jnp.float32)
    out = jax.block_until_ready(mlp_forward(x, prepared, sizes[-1]))
    ref = mlp_reference(x, params)
    assert out.shape == ref.shape
    assert jnp.allclose(out, ref, atol=1e-5, rtol=1e-5), "gridless mismatch"

    # 2) Larger batch -> batch-tiled path (tile forced small to exercise grid).
    x2 = jax.random.normal(kx2, (64, sizes[0]), jnp.float32)
    out2 = jax.block_until_ready(
        mlp_forward(x2, prepared, sizes[-1], max_batch_tile=16, force_tiled=True))
    ref2 = mlp_reference(x2, params)
    assert jnp.allclose(out2, ref2, atol=1e-5, rtol=1e-5), "tiled mismatch"

    # 3) bf16-stored weights (full MXU rate), f32 accumulation; looser tol.
    prepared_bf16 = prepare_mlp_params(params, weight_dtype=jnp.bfloat16)
    out3 = jax.block_until_ready(mlp_forward(x, prepared_bf16, sizes[-1]))
    assert jnp.allclose(out3, ref, atol=5e-2, rtol=5e-2), "bf16 mismatch"

    print("KERNEL_OK")
</pallas_src>

<mosaic_0001>
module attributes {stable_mosaic.version = 11 : i64} {
  func.func @_fused_mlp_kernel(%arg0: memref<8x128xf32, #tpu.memory_space<vmem>>, %arg1: memref<128x128xf32, #tpu.memory_space<vmem>>, %arg2: memref<1x128xf32, #tpu.memory_space<vmem>>, %arg3: memref<128x128xf32, #tpu.memory_space<vmem>>, %arg4: memref<1x128xf32, #tpu.memory_space<vmem>>, %arg5: memref<8x128xf32, #tpu.memory_space<vmem>>) attributes {dimension_semantics = [], scalar_prefetch = 0 : i64, scratch_operands = 0 : i64, tpu.core_type = #tpu.core_type<tc>} {
    %c0 = arith.constant 0 : index
    %c0_0 = arith.constant 0 : index
    %0 = vector.load %arg0[%c0, %c0_0] : memref<8x128xf32, #tpu.memory_space<vmem>>, vector<8x128xf32>
    %c0_1 = arith.constant 0 : index
    %c0_2 = arith.constant 0 : index
    %1 = vector.load %arg1[%c0_1, %c0_2] : memref<128x128xf32, #tpu.memory_space<vmem>>, vector<128x128xf32>
    %cst = arith.constant dense<0.000000e+00> : vector<8x128xf32>
    %2 = tpu.matmul %0, %1, %cst {dimension_numbers = #tpu.dot_dimension_numbers<[1], [0], [0], [1], [0, 0, 1, 1], [], []>} : vector<8x128xf32>, vector<128x128xf32>, vector<8x128xf32> -> vector<8x128xf32>
    %c0_3 = arith.constant 0 : index
    %c0_4 = arith.constant 0 : index
    %3 = vector.load %arg2[%c0_3, %c0_4] : memref<1x128xf32, #tpu.memory_space<vmem>>, vector<1x128xf32>
    %4 = vector.broadcast %3 : vector<1x128xf32> to vector<8x128xf32>
    %5 = arith.addf %2, %4 : vector<8x128xf32>
    %6 = math.tanh %5 : vector<8x128xf32>
    %c0_5 = arith.constant 0 : index
    %c0_6 = arith.constant 0 : index
    %7 = vector.load %arg3[%c0_5, %c0_6] : memref<128x128xf32, #tpu.memory_space<vmem>>, vector<128x128xf32>
    %cst_7 = arith.constant dense<0.000000e+00> : vector<8x128xf32>
    %8 = tpu.matmul %6, %7, %cst_7 {dimension_numbers = #tpu.dot_dimension_numbers<[1], [0], [0], [1], [0, 0, 1, 1], [], []>} : vector<8x128xf32>, vector<128x128xf32>, vector<8x128xf32> -> vector<8x128xf32>
    %c0_8 = arith.constant 0 : index
    %c0_9 = arith.constant 0 : index
    %9 = vector.load %arg4[%c0_8, %c0_9] : memref<1x128xf32, #tpu.memory_space<vmem>>, vector<1x128xf32>
    %10 = vector.broadcast %9 : vector<1x128xf32> to vector<8x128xf32>
    %11 = arith.addf %8, %10 : vector<8x128xf32>
    %c0_10 = arith.constant 0 : index
    %c0_11 = arith.constant 0 : index
    %12 = vector.load %arg5[%c0_10, %c0_11] : memref<8x128xf32, #tpu.memory_space<vmem>>, vector<8x128xf32>
    tpu.vector_store %arg5[%c0_10, %c0_11], %11 {strides = array<i32>} : memref<8x128xf32, #tpu.memory_space<vmem>>, vector<8x128xf32>,
    return
  }
}

</mosaic_0001>

<llo_original>
// kernel: tpu_custom_call.1
$region0: #{tpu_custom_call.1}
  #allocation0 [shape = 'u32[]', space=smem, size = 0x4, offset = 0x4, fixed_abs, tag = 'smem constant byte address 0x4 - core index']
  #allocation1 [shape = 'u32[144,128]{1,0:T(1,128)}', space=vmem, size = 0x12000, scoped, tag = 'internal scratch']
  %s0 = inlined_call_operand.hbm [shape: f32[8,128], index: 0, kind: input, shape index: {}]
  %s1 = inlined_call_operand.hbm [shape: f32[128,128], index: 1, kind: input, shape index: {}]
  %s2 = inlined_call_operand.vmem [shape: f32[1,128], index: 2, kind: input, shape index: {}]
  %s3 = inlined_call_operand.hbm [shape: f32[128,128], index: 3, kind: input, shape index: {}]
  %s4 = inlined_call_operand.vmem [shape: f32[1,128], index: 4, kind: input, shape index: {}]
  %s5 = inlined_call_operand.hbm [shape: f32[8,128], index: 5, kind: output, shape index: {}]
  %s6 = sld [smem:[#allocation0]]
  $region42: #{tpu_custom_call.1} parent=0
    _
  %s8 = ssub.s32 1, %s6
  %s9 = scalar_select 0, %s8, %s6
  $region1: #{tpu_custom_call.1} parent=0
    #allocation2 [shape = 'u8[4096]{0}', space=vmem, size = 0x1000, scoped, tag = 'input window, operand 0, single buffered']
    #allocation3 [shape = 's32[1]{0}', space=sflag, size = 0x4, scoped, tag = 'scoped memory for tpu_custom_call.1']
    #allocation4 [shape = 's32[1]{0}', space=sflag, size = 0x4, scoped, tag = 'scoped memory for tpu_custom_call.1']
    #allocation5 [shape = 'u8[65536]{0}', space=vmem, size = 0x10000, scoped, tag = 'input window, operand 1, single buffered']
    #allocation6 [shape = 's32[1]{0}', space=sflag, size = 0x4, scoped, tag = 'scoped memory for tpu_custom_call.1']
    #allocation7 [shape = 'u8[65536]{0}', space=vmem, size = 0x10000, scoped, tag = 'input window, operand 3, single buffered']
    #allocation8 [shape = 'u8[4096]{0}', space=vmem, size = 0x1000, scoped, tag = 'output window, operand 0, single buffered']
    %10 = vsyncpa [#allocation3], 0
    %11 = vsyncpa [#allocation6], 0
    %12 = vsyncpa [#allocation4], 0
    // Predicated region
    $region2: #{tpu_custom_call.1} parent=1 // pred_check
      _
    $region3: #{tpu_custom_call.1} parent=1 // pred_check_branch
      %14 = sbr.rel (0) target = $region5
    $region4: #{tpu_custom_call.1} parent=1 // pred_region
      %s16 = ssub.s32 128, 128
      %17 = vsyncadd [#allocation3], %s16
      %s19 = sshll.u32 [#allocation2], 4
      %s20 = int_to_ptr.vmem [resolvable:$true] %s19
      %22 = dma.hbm_to_vmem [thread:$0]  %s0, 128, %s20, [#allocation3]
    $region5: #{tpu_custom_call.1} parent=1 // pred_fallthru
      _
    // Predicated region
    $region6: #{tpu_custom_call.1} parent=1 // pred_check
      _
    $region7: #{tpu_custom_call.1} parent=1 // pred_check_branch
      %24 = sbr.rel (0) target = $region9
    $region8: #{tpu_custom_call.1} parent=1 // pred_region
      %s26 = ssub.s32 2048, 2048
      %27 = vsyncadd [#allocation6], %s26
      %s28 = sshll.u32 [#allocation5], 4
      %s29 = int_to_ptr.vmem [resolvable:$true] %s28
      %34 = dma.hbm_to_vmem [thread:$0]  %s1, 2048, %s29, [#allocation6], 128, 128, 8
    $region9: #{tpu_custom_call.1} parent=1 // pred_fallthru
      _
    // Predicated region
    $region10: #{tpu_custom_call.1} parent=1 // pred_check
      _
    $region11: #{tpu_custom_call.1} parent=1 // pred_check_branch
      %36 = sbr.rel (0) target = $region13
    $region12: #{tpu_custom_call.1} parent=1 // pred_region
      _
    $region13: #{tpu_custom_call.1} parent=1 // pred_fallthru
      _
    // Predicated region
    $region14: #{tpu_custom_call.1} parent=1 // pred_check
      _
    $region15: #{tpu_custom_call.1} parent=1 // pred_check_branch
      %38 = sbr.rel (0) target = $region17
    $region16: #{tpu_custom_call.1} parent=1 // pred_region
      %s40 = ssub.s32 2048, 2048
      %41 = vsyncadd [#allocation6], %s40
      %s42 = sshll.u32 [#allocation7], 4
      %s43 = int_to_ptr.vmem [resolvable:$true] %s42
      %48 = dma.hbm_to_vmem [thread:$0]  %s3, 2048, %s43, [#allocation6], 128, 128, 8
    $region17: #{tpu_custom_call.1} parent=1 // pred_fallthru
      _
    // Predicated region
    $region18: #{tpu_custom_call.1} parent=1 // pred_check
      _
    $region19: #{tpu_custom_call.1} parent=1 // pred_check_branch
      %50 = sbr.rel (0) target = $region21
    $region20: #{tpu_custom_call.1} parent=1 // pred_region
      _
    $region21: #{tpu_custom_call.1} parent=1 // pred_fallthru
      _
    // Predicated region
    $region22: #{tpu_custom_call.1} parent=1 // pred_check
      _
    $region23: #{tpu_custom_call.1} parent=1 // pred_check_branch
      %52 = sbr.rel (0) target = $region25
    $region24: #{tpu_custom_call.1} parent=1 // pred_region
      %53 = dma.done [#allocation3], 128
    $region25: #{tpu_custom_call.1} parent=1 // pred_fallthru
      _
    // Predicated region
    $region26: #{tpu_custom_call.1} parent=1 // pred_check
      _
    $region27: #{tpu_custom_call.1} parent=1 // pred_check_branch
      %55 = sbr.rel (0) target = $region29
    $region28: #{tpu_custom_call.1} parent=1 // pred_region
      %56 = dma.done [#allocation6], 2048
    $region29: #{tpu_custom_call.1} parent=1 // pred_fallthru
      _
    // Predicated region
    $region30: #{tpu_custom_call.1} parent=1 // pred_check
      _
    $region31: #{tpu_custom_call.1} parent=1 // pred_check_branch
      %58 = sbr.rel (0) target = $region33
    $region32: #{tpu_custom_call.1} parent=1 // pred_region
      %59 = dma.done [#allocation6], 2048
    $region33: #{tpu_custom_call.1} parent=1 // pred_fallthru
      _
    %v60 = vld [vmem:[#allocation2] sm:$0xff]
    %v61 = vld [vmem:[#allocation5] sm:$0xff]
    %v62 = vld [vmem:[#allocation5 + $0x8] sm:$0xff]
    %v63 = vld [vmem:[#allocation5 + $0x10] sm:$0xff]
    %v64 = vld [vmem:[#allocation5 + $0x18] sm:$0xff]
    %v65 = vld [vmem:[#allocation5 + $0x20] sm:$0xff]
    %v66 = vld [vmem:[#allocation5 + $0x28] sm:$0xff]
    %v67 = vld [vmem:[#allocation5 + $0x30] sm:$0xff]
    %v68 = vld [vmem:[#allocation5 + $0x38] sm:$0xff]
    %v69 = vld [vmem:[#allocation5 + $0x40] sm:$0xff]
    %v70 = vld [vmem:[#allocation5 + $0x48] sm:$0xff]
    %v71 = vld [vmem:[#allocation5 + $0x50] sm:$0xff]
    %v72 = vld [vmem:[#allocation5 + $0x58] sm:$0xff]
    %v73 = vld [vmem:[#allocation5 + $0x60] sm:$0xff]
    %v74 = vld [vmem:[#allocation5 + $0x68] sm:$0xff]
    %v75 = vld [vmem:[#allocation5 + $0x70] sm:$0xff]
    %v76 = vld [vmem:[#allocation5 + $0x78] sm:$0xff]
    %v77 = vld [vmem:[%s2] sm:$0x1]
    %v79 = vlaneseq
    %v80 = vshrl.u32 %v79, 7
    %v81 = vsub.s32 0, %v80
    %v82 = vrot.slane %v77, %v81
    %84 = vmatprep.subr.mxu0 0.0
    %85 = vmatpush1.msra.mxu0 %v61
    %86 = vmatprep.subr.mxu0 0.0
    %87 = vmatpush1.msra.mxu0 %v62
    %88 = vmatprep.subr.mxu0 0.0
    %89 = vmatpush1.msra.mxu0 %v63
    %90 = vmatprep.subr.mxu0 0.0
    %91 = vmatpush1.msra.mxu0 %v64
    %92 = vmatprep.subr.mxu0 0.0
    %93 = vmatpush1.msra.mxu0 %v65
    %94 = vmatprep.subr.mxu0 0.0
    %95 = vmatpush1.msra.mxu0 %v66
    %96 = vmatprep.subr.mxu0 0.0
    %97 = vmatpush1.msra.mxu0 %v67
    %98 = vmatprep.subr.mxu0 0.0
    %99 = vmatpush1.msra.mxu0 %v68
    %100 = vmatprep.subr.mxu0 0.0
    %101 = vmatpush1.msra.mxu0 %v69
    %102 = vmatprep.subr.mxu0 0.0
    %103 = vmatpush1.msra.mxu0 %v70
    %104 = vmatprep.subr.mxu0 0.0
    %105 = vmatpush1.msra.mxu0 %v71
    %106 = vmatprep.subr.mxu0 0.0
    %107 = vmatpush1.msra.mxu0 %v72
    %108 = vmatprep.subr.mxu0 0.0
    %109 = vmatpush1.msra.mxu0 %v73
    %110 = vmatprep.subr.mxu0 0.0
    %111 = vmatpush1.msra.mxu0 %v74
    %112 = vmatprep.subr.mxu0 0.0
    %113 = vmatpush1.msra.mxu0 %v75
    %114 = vmatprep.subr.mxu0 0.0
    %115 = vmatpush1.msra.mxu0 %v76
    %116 = vmatprep.subr.mxu0 0.0
    %117 = vmatpush1.msra.mxu0 0.0
    %118 = vmatprep.subr.mxu0 0.0
    %119 = vmatpush1.msra.mxu0 0.0
    %120 = vmatprep.subr.mxu0 0.0
    %121 = vmatpush1.msra.mxu0 0.0
    %122 = vmatprep.subr.mxu0 0.0
    %123 = vmatpush1.msra.mxu0 0.0
    %124 = vmatprep.subr.mxu0 0.0
    %125 = vmatpush1.msra.mxu0 0.0
    %126 = vmatprep.subr.mxu0 0.0
    %127 = vmatpush1.msra.mxu0 0.0
    %128 = vmatprep.subr.mxu0 0.0
    %129 = vmatpush1.msra.mxu0 0.0
    %130 = vmatprep.subr.mxu0 0.0
    %131 = vmatpush1.msra.mxu0 0.0
    %132 = vmatprep.subr.mxu0 0.0
    %133 = vmatpush1.msra.mxu0 0.0
    %134 = vmatprep.subr.mxu0 0.0
    %135 = vmatpush1.msra.mxu0 0.0
    %136 = vmatprep.subr.mxu0 0.0
    %137 = vmatpush1.msra.mxu0 0.0
    %138 = vmatprep.subr.mxu0 0.0
    %139 = vmatpush1.msra.mxu0 0.0
    %140 = vmatprep.subr.mxu0 0.0
    %141 = vmatpush1.msra.mxu0 0.0
    %142 = vmatprep.subr.mxu0 0.0
    %143 = vmatpush1.msra.mxu0 0.0
    %144 = vmatprep.subr.mxu0 0.0
    %145 = vmatpush1.msra.mxu0 0.0
    %146 = vmatprep.subr.mxu0 0.0
    %147 = vmatpush1.msra.mxu0 0.0
    %148 = vmatprep.mubr.f32.mxu0 0.0
    %149 = vmatmul.mubr.f32.gmra.mrb[0].mxu0 %v60
    %v150 = vpop.f32.mrb[0].mxu0
    %v151 = vadd.f32 %v82, %v150
    %v152 = vpop.f32.mrb[0].mxu0
    %153 = vdwg.mxu0
    %v154 = vtanh.pop %v151
    %v155 = vld [vmem:[#allocation7] sm:$0xff]
    %v156 = vld [vmem:[#allocation7 + $0x8] sm:$0xff]
    %v157 = vld [vmem:[#allocation7 + $0x10] sm:$0xff]
    %v158 = vld [vmem:[#allocation7 + $0x18] sm:$0xff]
    %v159 = vld [vmem:[#allocation7 + $0x20] sm:$0xff]
    %v160 = vld [vmem:[#allocation7 + $0x28] sm:$0xff]
    %v161 = vld [vmem:[#allocation7 + $0x30] sm:$0xff]
    %v162 = vld [vmem:[#allocation7 + $0x38] sm:$0xff]
    %v163 = vld [vmem:[#allocation7 + $0x40] sm:$0xff]
    %v164 = vld [vmem:[#allocation7 + $0x48] sm:$0xff]
    %v165 = vld [vmem:[#allocation7 + $0x50] sm:$0xff]
    %v166 = vld [vmem:[#allocation7 + $0x58] sm:$0xff]
    %v167 = vld [vmem:[#allocation7 + $0x60] sm:$0xff]
    %v168 = vld [vmem:[#allocation7 + $0x68] sm:$0xff]
    %v169 = vld [vmem:[#allocation7 + $0x70] sm:$0xff]
    %v170 = vld [vmem:[#allocation7 + $0x78] sm:$0xff]
    %v171 = vld [vmem:[%s4] sm:$0x1]
    %v173 = vlaneseq
    %v174 = vshrl.u32 %v173, 7
    %v175 = vsub.s32 0, %v174
    %v176 = vrot.slane %v171, %v175
    %178 = vmatprep.subr.mxu0 0.0
    %179 = vmatpush1.msra.mxu0 %v155
    %180 = vmatprep.subr.mxu0 0.0
    %181 = vmatpush1.msra.mxu0 %v156
    %182 = vmatprep.subr.mxu0 0.0
    %183 = vmatpush1.msra.mxu0 %v157
    %184 = vmatprep.subr.mxu0 0.0
    %185 = vmatpush1.msra.mxu0 %v158
    %186 = vmatprep.subr.mxu0 0.0
    %187 = vmatpush1.msra.mxu0 %v159
    %188 = vmatprep.subr.mxu0 0.0
    %189 = vmatpush1.msra.mxu0 %v160
    %190 = vmatprep.subr.mxu0 0.0
    %191 = vmatpush1.msra.mxu0 %v161
    %192 = vmatprep.subr.mxu0 0.0
    %193 = vmatpush1.msra.mxu0 %v162
    %194 = vmatprep.subr.mxu0 0.0
    %195 = vmatpush1.msra.mxu0 %v163
    %196 = vmatprep.subr.mxu0 0.0
    %197 = vmatpush1.msra.mxu0 %v164
    %198 = vmatprep.subr.mxu0 0.0
    %199 = vmatpush1.msra.mxu0 %v165
    %200 = vmatprep.subr.mxu0 0.0
    %201 = vmatpush1.msra.mxu0 %v166
    %202 = vmatprep.subr.mxu0 0.0
    %203 = vmatpush1.msra.mxu0 %v167
    %204 = vmatprep.subr.mxu0 0.0
    %205 = vmatpush1.msra.mxu0 %v168
    %206 = vmatprep.subr.mxu0 0.0
    %207 = vmatpush1.msra.mxu0 %v169
    %208 = vmatprep.subr.mxu0 0.0
    %209 = vmatpush1.msra.mxu0 %v170
    %210 = vmatprep.subr.mxu0 0.0
    %211 = vmatpush1.msra.mxu0 0.0
    %212 = vmatprep.subr.mxu0 0.0
    %213 = vmatpush1.msra.mxu0 0.0
    %214 = vmatprep.subr.mxu0 0.0
    %215 = vmatpush1.msra.mxu0 0.0
    %216 = vmatprep.subr.mxu0 0.0
    %217 = vmatpush1.msra.mxu0 0.0
    %218 = vmatprep.subr.mxu0 0.0
    %219 = vmatpush1.msra.mxu0 0.0
    %220 = vmatprep.subr.mxu0 0.0
    %221 = vmatpush1.msra.mxu0 0.0
    %222 = vmatprep.subr.mxu0 0.0
    %223 = vmatpush1.msra.mxu0 0.0
    %224 = vmatprep.subr.mxu0 0.0
    %225 = vmatpush1.msra.mxu0 0.0
    %226 = vmatprep.subr.mxu0 0.0
    %227 = vmatpush1.msra.mxu0 0.0
    %228 = vmatprep.subr.mxu0 0.0
    %229 = vmatpush1.msra.mxu0 0.0
    %230 = vmatprep.subr.mxu0 0.0
    %231 = vmatpush1.msra.mxu0 0.0
    %232 = vmatprep.subr.mxu0 0.0
    %233 = vmatpush1.msra.mxu0 0.0
    %234 = vmatprep.subr.mxu0 0.0
    %235 = vmatpush1.msra.mxu0 0.0
    %236 = vmatprep.subr.mxu0 0.0
    %237 = vmatpush1.msra.mxu0 0.0
    %238 = vmatprep.subr.mxu0 0.0
    %239 = vmatpush1.msra.mxu0 0.0
    %240 = vmatprep.subr.mxu0 0.0
    %241 = vmatpush1.msra.mxu0 0.0
    %242 = vmatprep.mubr.f32.mxu0 0.0
    %243 = vmatmul.mubr.f32.gmra.mrb[0].mxu0 %v154
    %v244 = vpop.f32.mrb[0].mxu0
    %v245 = vadd.f32 %v176, %v244
    %v246 = vpop.f32.mrb[0].mxu0
    %247 = vdwg.mxu0
    %248 = vst [vmem:[#allocation8] sm:$0xff] %v245
    // Predicated region
    $region34: #{tpu_custom_call.1} parent=1 // pred_check
      _
    $region35: #{tpu_custom_call.1} parent=1 // pred_check_branch
      %250 = sbr.rel (0) target = $region37
    $region36: #{tpu_custom_call.1} parent=1 // pred_region
      %s252 = ssub.s32 128, 128
      %253 = vsyncadd [#allocation4], %s252
      %s255 = sshll.u32 [#allocation8], 4
      %s256 = int_to_ptr.vmem [resolvable:$true] %s255
      %258 = dma.vmem_to_hbm [thread:$0]  %s256, 128, %s5, [#allocation4]
    $region37: #{tpu_custom_call.1} parent=1 // pred_fallthru
      _
    // Predicated region
    $region38: #{tpu_custom_call.1} parent=1 // pred_check
      _
    $region39: #{tpu_custom_call.1} parent=1 // pred_check_branch
      %260 = sbr.rel (0) target = $region41
    $region40: #{tpu_custom_call.1} parent=1 // pred_region
      %261 = dma.done [#allocation4], 128
    $region41: #{tpu_custom_call.1} parent=1 // pred_fallthru
      _
    %262 = vsyncpa [#allocation3], 1
    %263 = vsyncpa [#allocation6], 1
    %264 = vsyncpa [#allocation4], 1

</llo_original>
